<compile_context>
chip_gen: v7x
topology: tpu7x:2x2x1
jax: 0.10.0
libtpu: 0.0.40
codegen_flags: <defaults>
</compile_context>

<pallas_src>
import jax
import jax.numpy as jnp
from jax.experimental import pallas as pl
from jax.experimental.pallas import tpu as pltpu


def _round_up(x: int, m: int) -> int:
    return ((x + m - 1) // m) * m


def _diag_embed_kernel(d_ref, out_ref):
    """Writes out[i, j] = d[i] if (global) i == j else 0 for one (t, t) tile.

    d_ref:   (t, 1) damping values for this tile's row range.
    out_ref: (t, t) output tile.  Square tiles => the diagonal only crosses
             tiles with program_id(0) == program_id(1).
    """
    i = pl.program_id(0)
    j = pl.program_id(1)

    @pl.when(i != j)
    def _():
        # Off-diagonal tile: pure zero store (mem-bound floor, no iota/select).
        out_ref[...] = jnp.zeros(out_ref.shape, out_ref.dtype)

    @pl.when(i == j)
    def _():
        t = out_ref.shape[0]
        row = jax.lax.broadcasted_iota(jnp.int32, (t, t), 0)
        col = jax.lax.broadcasted_iota(jnp.int32, (t, t), 1)
        out_ref[...] = jnp.where(row == col, d_ref[...], 0.0).astype(out_ref.dtype)


def r_estimator_forward(x, pick_rs, rs):
    """Pallas equivalent of R_estimator.forward. x is accepted but unused,
    matching the PyTorch module."""
    del x  # forward() ignores its argument
    nstates = pick_rs.shape[0]

    # Edge case: no damped states -> zero-width parameter arrays; Mosaic
    # cannot lower zero-sized lane dims, and the answer is all zeros anyway.
    if pick_rs.shape[1] == 0:
        return jnp.zeros((nstates, nstates), dtype=jnp.float32)

    # Precompute per-state damping d = |pick_rs| @ rs in plain XLA (tiny
    # matvec over a static one-hot selector) — the kernel only diag-embeds.
    d = jnp.abs(pick_rs.astype(jnp.float32)) @ rs.astype(jnp.float32)  # (N,)

    # Lane-dense, square padded output; square tiles so the diagonal only
    # lives on grid-diagonal tiles.
    n_pad = _round_up(nstates, 128)
    tile = min(n_pad, 256)
    grid = (n_pad // tile, n_pad // tile)

    d_pad = jnp.zeros((n_pad, 1), dtype=jnp.float32).at[:nstates, 0].set(d)

    out_pad = pl.pallas_call(
        _diag_embed_kernel,
        out_shape=jax.ShapeDtypeStruct((n_pad, n_pad), jnp.float32),
        grid=grid,
        in_specs=[pl.BlockSpec((tile, 1), lambda i, j: (i, 0))],
        out_specs=pl.BlockSpec((tile, tile), lambda i, j: (i, j)),
        compiler_params=pltpu.CompilerParams(
            dimension_semantics=("parallel", "parallel")),
    )(d_pad)

    return out_pad[:nstates, :nstates]


def build_params(state_is_damped, key):
    """Deterministic parameter construction mirroring R_estimator.__init__."""
    state_is_damped = jnp.asarray(state_is_damped, dtype=bool)
    nstates = state_is_damped.shape[0]
    n_damped = int(jnp.sum(state_is_damped))
    # pick_rs: one-hot selector mapping each damped state to its parameter slot.
    pick = jnp.zeros((nstates, n_damped), dtype=jnp.float32)
    c = 0
    for i in range(nstates):
        if bool(state_is_damped[i]):
            pick = pick.at[i, c].set(1.0)
            c += 1
    # nn.Parameter(torch.zeros(...)) in the module; use deterministic random
    # values so the kernel output is non-trivial (synthetic weights).
    rs = jax.random.normal(key, (n_damped,), dtype=jnp.float32)
    return pick, rs


if __name__ == "__main__":
    key = jax.random.PRNGKey(0)
    k_rs, k_x = jax.random.split(key)

    # Small, module-consistent shapes: 8 states, 5 of them damped.
    state_is_damped = [True, False, True, True, False, True, False, True]
    pick_rs, rs = build_params(state_is_damped, k_rs)

    # x is ignored by forward(); give it a plausible (batch, nstates) shape.
    x = jax.random.normal(k_x, (2, len(state_is_damped)), dtype=jnp.float32)

    out = jax.block_until_ready(r_estimator_forward(x, pick_rs, rs))

    # Pure-JAX reference for sanity checking.
    ref = jnp.diag(jnp.abs(pick_rs) @ rs)
    assert out.shape == (len(state_is_damped), len(state_is_damped))
    assert jnp.allclose(out, ref, atol=1e-6), "mismatch vs reference"

    # Edge case: no damped states -> all-zero R (kernel bypassed in wrapper).
    pick0, rs0 = build_params([False, False, False, False], k_rs)
    out0 = jax.block_until_ready(r_estimator_forward(x, pick0, rs0))
    assert out0.shape == (4, 4)
    assert jnp.allclose(out0, jnp.zeros((4, 4))), "n_damped=0 case mismatch"

    print("KERNEL_OK")
</pallas_src>

<mosaic_0001>
module attributes {stable_mosaic.version = 11 : i64} {
  func.func @_diag_embed_kernel(%arg0: i32, %arg1: i32, %arg2: memref<128x1xf32, #tpu.memory_space<vmem>>, %arg3: memref<128x128xf32, #tpu.memory_space<vmem>>) attributes {dimension_semantics = [#tpu.dimension_semantics<parallel>, #tpu.dimension_semantics<parallel>], iteration_bounds = array<i64: 1, 1>, scalar_prefetch = 0 : i64, scratch_operands = 0 : i64, tpu.core_type = #tpu.core_type<tc>, window_params = [{transform_indices = @transform_0, window_bounds = array<i64: 128, 1>}, {transform_indices = @transform_1, window_bounds = array<i64: 128, 128>}]} {
    %0 = arith.cmpi ne, %arg0, %arg1 : i32
    %1 = arith.extui %0 : i1 to i32
    %c0_i32 = arith.constant 0 : i32
    %2 = arith.cmpi ne, %1, %c0_i32 : i32
    scf.if %2 {
      %cst = arith.constant 0.000000e+00 : f32
      %6 = vector.broadcast %cst : f32 to vector<128x128xf32>
      %c0 = arith.constant 0 : index
      %c0_1 = arith.constant 0 : index
      %7 = vector.load %arg3[%c0, %c0_1] : memref<128x128xf32, #tpu.memory_space<vmem>>, vector<128x128xf32>
      tpu.vector_store %arg3[%c0, %c0_1], %6 {strides = array<i32>} : memref<128x128xf32, #tpu.memory_space<vmem>>, vector<128x128xf32>,
    } else {
    }
    %3 = arith.cmpi eq, %arg0, %arg1 : i32
    %4 = arith.extui %3 : i1 to i32
    %c0_i32_0 = arith.constant 0 : i32
    %5 = arith.cmpi ne, %4, %c0_i32_0 : i32
    scf.if %5 {
      %6 = tpu.iota {dimensions = array<i32: 0>} : vector<128x128xi32>
      %7 = tpu.iota {dimensions = array<i32: 1>} : vector<128x128xi32>
      %8 = arith.cmpi eq, %6, %7 : vector<128x128xi32>
      %c0 = arith.constant 0 : index
      %c0_1 = arith.constant 0 : index
      %9 = vector.load %arg2[%c0, %c0_1] : memref<128x1xf32, #tpu.memory_space<vmem>>, vector<128x1xf32>
      %cst = arith.constant 0.000000e+00 : f32
      %10 = vector.shape_cast %9 : vector<128x1xf32> to vector<128x1xf32>
      %11 = vector.broadcast %10 : vector<128x1xf32> to vector<128x128xf32>
      %12 = vector.broadcast %cst : f32 to vector<128x128xf32>
      %13 = arith.select %8, %11, %12 : vector<128x128xi1>, vector<128x128xf32>
      %c0_2 = arith.constant 0 : index
      %c0_3 = arith.constant 0 : index
      %14 = vector.load %arg3[%c0_2, %c0_3] : memref<128x128xf32, #tpu.memory_space<vmem>>, vector<128x128xf32>
      tpu.vector_store %arg3[%c0_2, %c0_3], %13 {strides = array<i32>} : memref<128x128xf32, #tpu.memory_space<vmem>>, vector<128x128xf32>,
    } else {
    }
    return
  }
  func.func @transform_0(%arg0: i32, %arg1: i32) -> (i32, i32) {
    %c0_i32 = arith.constant 0 : i32
    %c0_i32_0 = arith.constant 0 : i32
    return %arg0, %c0_i32 : i32, i32
  }
  func.func @transform_1(%arg0: i32, %arg1: i32) -> (i32, i32) {
    %c0_i32 = arith.constant 0 : i32
    return %arg0, %arg1 : i32, i32
  }
}

</mosaic_0001>

<llo_original>
// kernel: tpu_custom_call.1
$region0: #{tpu_custom_call.1}
  #allocation0 [shape = 'u32[]', space=smem, size = 0x4, offset = 0x4, fixed_abs, tag = 'smem constant byte address 0x4 - core index']
  #allocation1 [shape = 'u32[144,128]{1,0:T(1,128)}', space=vmem, size = 0x12000, scoped, tag = 'internal scratch']
  %s0 = inlined_call_operand.vmem [shape: f32[128,1], index: 0, kind: input, shape index: {}]
  %s1 = inlined_call_operand.hbm [shape: f32[128,128], index: 1, kind: output, shape index: {}]
  %s2 = sld [smem:[#allocation0]]
  $region22: #{tpu_custom_call.1} parent=0
    _
  %s4 = ssub.s32 1, %s2
  %s5 = scalar_select 0, %s4, %s2
  $region1: #{tpu_custom_call.1} parent=0
    #allocation2 [shape = 'u8[65536]{0}', space=vmem, size = 0x10000, scoped, tag = 'output window, operand 0, single buffered']
    #allocation3 [shape = 's32[1]{0}', space=sflag, size = 0x4, scoped, tag = 'scoped memory for tpu_custom_call.1']
    %6 = vsyncpa [#allocation3], 0
    // Predicated region
    $region2: #{tpu_custom_call.1} parent=1 // pred_check
      _
    $region3: #{tpu_custom_call.1} parent=1 // pred_check_branch
      %8 = sbr.rel (0) target = $region5
    $region4: #{tpu_custom_call.1} parent=1 // pred_region
      _
    $region5: #{tpu_custom_call.1} parent=1 // pred_fallthru
      _
    %p9 = scmp.ne.s32.totalorder 0, 0
    // Predicated region
    $region6: #{tpu_custom_call.1} parent=1 // pred_check
      %p10 = pneg %p9
    $region7: #{tpu_custom_call.1} parent=1 // pred_check_branch
      %12 = sbr.rel (%p10) target = $region9
    $region8: #{tpu_custom_call.1} parent=1 // pred_region
      %13 = vst [vmem:[#allocation2] sm:$0xff] 0.0
      %14 = vst [vmem:[#allocation2 + $0x8] sm:$0xff] 0.0
      %15 = vst [vmem:[#allocation2 + $0x10] sm:$0xff] 0.0
      %16 = vst [vmem:[#allocation2 + $0x18] sm:$0xff] 0.0
      %17 = vst [vmem:[#allocation2 + $0x20] sm:$0xff] 0.0
      %18 = vst [vmem:[#allocation2 + $0x28] sm:$0xff] 0.0
      %19 = vst [vmem:[#allocation2 + $0x30] sm:$0xff] 0.0
      %20 = vst [vmem:[#allocation2 + $0x38] sm:$0xff] 0.0
      %21 = vst [vmem:[#allocation2 + $0x40] sm:$0xff] 0.0
      %22 = vst [vmem:[#allocation2 + $0x48] sm:$0xff] 0.0
      %23 = vst [vmem:[#allocation2 + $0x50] sm:$0xff] 0.0
      %24 = vst [vmem:[#allocation2 + $0x58] sm:$0xff] 0.0
      %25 = vst [vmem:[#allocation2 + $0x60] sm:$0xff] 0.0
      %26 = vst [vmem:[#allocation2 + $0x68] sm:$0xff] 0.0
      %27 = vst [vmem:[#allocation2 + $0x70] sm:$0xff] 0.0
      %28 = vst [vmem:[#allocation2 + $0x78] sm:$0xff] 0.0
    $region9: #{tpu_custom_call.1} parent=1 // pred_fallthru
      _
    %p29 = scmp.eq.s32.totalorder 0, 0
    // Predicated region
    $region10: #{tpu_custom_call.1} parent=1 // pred_check
      %p30 = pneg %p29
    $region11: #{tpu_custom_call.1} parent=1 // pred_check_branch
      %32 = sbr.rel (%p30) target = $region13
    $region12: #{tpu_custom_call.1} parent=1 // pred_region
      %v33 = vlaneseq
      %v34 = vshrl.u32 %v33, 7
      %v35 = vadd.s32 %v34, 8
      %v36 = vadd.s32 %v34, 16
      %v37 = vadd.s32 %v34, 24
      %v38 = vadd.s32 %v34, 32
      %v39 = vadd.s32 %v34, 40
      %v40 = vadd.s32 %v34, 48
      %v41 = vadd.s32 %v34, 56
      %v42 = vadd.s32 %v34, 64
      %v43 = vadd.s32 %v34, 72
      %v44 = vadd.s32 %v34, 80
      %v45 = vadd.s32 %v34, 88
      %v46 = vadd.s32 %v34, 96
      %v47 = vadd.s32 %v34, 104
      %v48 = vadd.s32 %v34, 112
      %v49 = vadd.s32 %v34, 120
      %v50 = vlaneseq
      %v51 = vand.u32 %v50, 127
      %vm52 = vcmp.eq.s32.totalorder %v34, %v51
      %vm53 = vcmp.eq.s32.totalorder %v35, %v51
      %vm54 = vcmp.eq.s32.totalorder %v36, %v51
      %vm55 = vcmp.eq.s32.totalorder %v37, %v51
      %vm56 = vcmp.eq.s32.totalorder %v38, %v51
      %vm57 = vcmp.eq.s32.totalorder %v39, %v51
      %vm58 = vcmp.eq.s32.totalorder %v40, %v51
      %vm59 = vcmp.eq.s32.totalorder %v41, %v51
      %vm60 = vcmp.eq.s32.totalorder %v42, %v51
      %vm61 = vcmp.eq.s32.totalorder %v43, %v51
      %vm62 = vcmp.eq.s32.totalorder %v44, %v51
      %vm63 = vcmp.eq.s32.totalorder %v45, %v51
      %vm64 = vcmp.eq.s32.totalorder %v46, %v51
      %vm65 = vcmp.eq.s32.totalorder %v47, %v51
      %vm66 = vcmp.eq.s32.totalorder %v48, %v51
      %vm67 = vcmp.eq.s32.totalorder %v49, %v51
      %v68 = vld [vmem:[%s0] sm:$0xff]
      %v69 = vld [vmem:[%s0 + $0x8] sm:$0xff]
      %v70 = vld [vmem:[%s0 + $0x10] sm:$0xff]
      %v71 = vld [vmem:[%s0 + $0x18] sm:$0xff]
      %v72 = vld [vmem:[%s0 + $0x20] sm:$0xff]
      %v73 = vld [vmem:[%s0 + $0x28] sm:$0xff]
      %v74 = vld [vmem:[%s0 + $0x30] sm:$0xff]
      %v75 = vld [vmem:[%s0 + $0x38] sm:$0xff]
      %v76 = vld [vmem:[%s0 + $0x40] sm:$0xff]
      %v77 = vld [vmem:[%s0 + $0x48] sm:$0xff]
      %v78 = vld [vmem:[%s0 + $0x50] sm:$0xff]
      %v79 = vld [vmem:[%s0 + $0x58] sm:$0xff]
      %v80 = vld [vmem:[%s0 + $0x60] sm:$0xff]
      %v81 = vld [vmem:[%s0 + $0x68] sm:$0xff]
      %v82 = vld [vmem:[%s0 + $0x70] sm:$0xff]
      %v83 = vld [vmem:[%s0 + $0x78] sm:$0xff]
      %85 = vset.pattern.permute.xlu0 0
      %86 = vperm.xlu0 %85, %v68
      %v87 = vpop.permute.xlu0 %86
      %90 = vset.pattern.permute.xlu0 0
      %91 = vperm.xlu0 %90, %v69
      %v92 = vpop.permute.xlu0 %91
      %95 = vset.pattern.permute.xlu0 0
      %96 = vperm.xlu0 %95, %v70
      %v97 = vpop.permute.xlu0 %96
      %100 = vset.pattern.permute.xlu0 0
      %101 = vperm.xlu0 %100, %v71
      %v102 = vpop.permute.xlu0 %101
      %105 = vset.pattern.permute.xlu0 0
      %106 = vperm.xlu0 %105, %v72
      %v107 = vpop.permute.xlu0 %106
      %110 = vset.pattern.permute.xlu0 0
      %111 = vperm.xlu0 %110, %v73
      %v112 = vpop.permute.xlu0 %111
      %115 = vset.pattern.permute.xlu0 0
      %116 = vperm.xlu0 %115, %v74
      %v117 = vpop.permute.xlu0 %116
      %120 = vset.pattern.permute.xlu0 0
      %121 = vperm.xlu0 %120, %v75
      %v122 = vpop.permute.xlu0 %121
      %125 = vset.pattern.permute.xlu0 0
      %126 = vperm.xlu0 %125, %v76
      %v127 = vpop.permute.xlu0 %126
      %130 = vset.pattern.permute.xlu0 0
      %131 = vperm.xlu0 %130, %v77
      %v132 = vpop.permute.xlu0 %131
      %135 = vset.pattern.permute.xlu0 0
      %136 = vperm.xlu0 %135, %v78
      %v137 = vpop.permute.xlu0 %136
      %140 = vset.pattern.permute.xlu0 0
      %141 = vperm.xlu0 %140, %v79
      %v142 = vpop.permute.xlu0 %141
      %145 = vset.pattern.permute.xlu0 0
      %146 = vperm.xlu0 %145, %v80
      %v147 = vpop.permute.xlu0 %146
      %150 = vset.pattern.permute.xlu0 0
      %151 = vperm.xlu0 %150, %v81
      %v152 = vpop.permute.xlu0 %151
      %155 = vset.pattern.permute.xlu0 0
      %156 = vperm.xlu0 %155, %v82
      %v157 = vpop.permute.xlu0 %156
      %160 = vset.pattern.permute.xlu0 0
      %161 = vperm.xlu0 %160, %v83
      %v162 = vpop.permute.xlu0 %161
      %v164 = vsel %vm52, %v87, 0.0
      %v165 = vsel %vm53, %v92, 0.0
      %v166 = vsel %vm54, %v97, 0.0
      %v167 = vsel %vm55, %v102, 0.0
      %v168 = vsel %vm56, %v107, 0.0
      %v169 = vsel %vm57, %v112, 0.0
      %v170 = vsel %vm58, %v117, 0.0
      %v171 = vsel %vm59, %v122, 0.0
      %v172 = vsel %vm60, %v127, 0.0
      %v173 = vsel %vm61, %v132, 0.0
      %v174 = vsel %vm62, %v137, 0.0
      %v175 = vsel %vm63, %v142, 0.0
      %v176 = vsel %vm64, %v147, 0.0
      %v177 = vsel %vm65, %v152, 0.0
      %v178 = vsel %vm66, %v157, 0.0
      %v179 = vsel %vm67, %v162, 0.0
      %180 = vst [vmem:[#allocation2] sm:$0xff] %v164
      %181 = vst [vmem:[#allocation2 + $0x8] sm:$0xff] %v165
      %182 = vst [vmem:[#allocation2 + $0x10] sm:$0xff] %v166
      %183 = vst [vmem:[#allocation2 + $0x18] sm:$0xff] %v167
      %184 = vst [vmem:[#allocation2 + $0x20] sm:$0xff] %v168
      %185 = vst [vmem:[#allocation2 + $0x28] sm:$0xff] %v169
      %186 = vst [vmem:[#allocation2 + $0x30] sm:$0xff] %v170
      %187 = vst [vmem:[#allocation2 + $0x38] sm:$0xff] %v171
      %188 = vst [vmem:[#allocation2 + $0x40] sm:$0xff] %v172
      %189 = vst [vmem:[#allocation2 + $0x48] sm:$0xff] %v173
      %190 = vst [vmem:[#allocation2 + $0x50] sm:$0xff] %v174
      %191 = vst [vmem:[#allocation2 + $0x58] sm:$0xff] %v175
      %192 = vst [vmem:[#allocation2 + $0x60] sm:$0xff] %v176
      %193 = vst [vmem:[#allocation2 + $0x68] sm:$0xff] %v177
      %194 = vst [vmem:[#allocation2 + $0x70] sm:$0xff] %v178
      %195 = vst [vmem:[#allocation2 + $0x78] sm:$0xff] %v179
    $region13: #{tpu_custom_call.1} parent=1 // pred_fallthru
      _
    // Predicated region
    $region14: #{tpu_custom_call.1} parent=1 // pred_check
      _
    $region15: #{tpu_custom_call.1} parent=1 // pred_check_branch
      %197 = sbr.rel (0) target = $region17
    $region16: #{tpu_custom_call.1} parent=1 // pred_region
      %s199 = ssub.s32 2048, 2048
      %200 = vsyncadd [#allocation3], %s199
      %s201 = sshll.u32 [#allocation2], 4
      %s202 = int_to_ptr.vmem [resolvable:$true] %s201
      %207 = dma.vmem_to_hbm [thread:$0]  %s202, 2048, %s1, [#allocation3], 128, 128, 8
    $region17: #{tpu_custom_call.1} parent=1 // pred_fallthru
      _
    // Predicated region
    $region18: #{tpu_custom_call.1} parent=1 // pred_check
      _
    $region19: #{tpu_custom_call.1} parent=1 // pred_check_branch
      %209 = sbr.rel (0) target = $region21
    $region20: #{tpu_custom_call.1} parent=1 // pred_region
      %210 = dma.done [#allocation3], 2048
    $region21: #{tpu_custom_call.1} parent=1 // pred_fallthru
      _
    %211 = vsyncpa [#allocation3], 1

</llo_original>
